<compile_context>
chip_gen: v6e
topology: v6e:2x2x1
jax: 0.10.0
libtpu: 0.0.40
codegen_flags: <defaults>
</compile_context>

<pallas_src>
import jax
import jax.numpy as jnp
from jax.experimental import pallas as pl
from jax.experimental.pallas import tpu as pltpu


def _variance_head_kernel(h_ref, wcat_ref, bcat_ref, eps_ref,
                          z_ref, mu_ref, logvar_ref):
    """One batch tile: fused [mu | logvar] projection + reparameterization."""
    h = h_ref[...]                                               # (TM, D)
    # Single lane-dense MXU pass: (TM, D) @ (D, 2L) -> (TM, 2L), f32 accumulate.
    proj = jnp.dot(h, wcat_ref[...],
                   preferred_element_type=jnp.float32) + bcat_ref[...]

    L = z_ref.shape[-1]
    mu = proj[:, :L]
    logvar = proj[:, L:]

    # Reparameterization trick: z = mu + eps * exp(0.5 * logvar).
    # exp lands on the EUP slot; the rest is VPU filler under the HBM roofline.
    std = jnp.exp(0.5 * logvar)
    z = mu + eps_ref[...] * std

    z_ref[...] = z.astype(z_ref.dtype)
    mu_ref[...] = mu.astype(mu_ref.dtype)
    logvar_ref[...] = logvar.astype(logvar_ref.dtype)


def _round_up(x, m):
    return ((x + m - 1) // m) * m


def variance_modeling_head(h_shared, w_mu, b_mu, w_lv, b_lv, key, *, block_m=2048):
    """Pallas implementation of VarianceModelingHead.forward.

    Args:
      h_shared: (B, D) shared trunk output.
      w_mu, w_lv: (D, L) projection weights (PyTorch Linear weights pre-transposed).
      b_mu, b_lv: (L,) biases.
      key: jax.random key used for eps (role of torch.randn_like -- fresh Gaussian
           noise each call; not bit-identical to torch's RNG stream).
      block_m: max row tile.  2048 is safe for the 16 MiB v5e scoped-VMEM default;
               raise toward 4096 on v6e/v7x if profiling shows exposed step overhead.

    Returns (z_V, mu, logvar), each (B, L) float32.
    """
    B, D = h_shared.shape
    L = w_mu.shape[1]
    L2 = 2 * L

    # Fuse both projections into one weight / bias (layout plumbing in the wrapper).
    w_cat = jnp.concatenate([w_mu, w_lv], axis=1)                              # (D, 2L)
    b_cat = jnp.concatenate([b_mu.reshape(1, L), b_lv.reshape(1, L)], axis=1)  # (1, 2L)

    # eps ~ N(0,1) generated outside the kernel (torch.randn_like semantics).
    eps = jax.random.normal(key, (B, L), dtype=jnp.float32)

    # Row tile: big enough to amortize per-step overhead, but aim for >= 2 grid
    # steps so v7x's second TensorCore gets work ("parallel" axis sharding).
    if B <= 8:
        tm = B
    else:
        tm = min(block_m, max(8, _round_up(pl.cdiv(B, 2), 8)))
    grid = (pl.cdiv(B, tm),)

    grid_spec = pltpu.PrefetchScalarGridSpec(
        num_scalar_prefetch=0,
        grid=grid,
        in_specs=[
            pl.BlockSpec((tm, D), lambda i: (i, 0)),     # h tile (pipelined)
            pl.BlockSpec((D, L2), lambda i: (0, 0)),     # fused weights (resident)
            pl.BlockSpec((1, L2), lambda i: (0, 0)),     # fused bias (resident)
            pl.BlockSpec((tm, L), lambda i: (i, 0)),     # eps tile (pipelined)
        ],
        out_specs=(
            pl.BlockSpec((tm, L), lambda i: (i, 0)),     # z
            pl.BlockSpec((tm, L), lambda i: (i, 0)),     # mu
            pl.BlockSpec((tm, L), lambda i: (i, 0)),     # logvar
        ),
    )

    # Advisory cost so XLA can overlap neighbouring ops with this HBM-bound kernel.
    cost = pl.CostEstimate(
        flops=2 * B * D * L2 + 4 * B * L,
        transcendentals=B * L,                           # exp(0.5 * logvar)
        bytes_accessed=4 * (B * D + D * L2 + L2 + B * L + 3 * B * L),
    )

    z, mu, logvar = pl.pallas_call(
        _variance_head_kernel,
        grid_spec=grid_spec,
        out_shape=(
            jax.ShapeDtypeStruct((B, L), jnp.float32),
            jax.ShapeDtypeStruct((B, L), jnp.float32),
            jax.ShapeDtypeStruct((B, L), jnp.float32),
        ),
        compiler_params=pltpu.CompilerParams(
            dimension_semantics=("parallel",),           # v7x: shard rows over 2 TCs
        ),
        cost_estimate=cost,
    )(h_shared, w_cat, b_cat, eps)

    return z, mu, logvar


if __name__ == "__main__":
    # Small shapes consistent with the module: batch=8, input_dim=32, latent_dim=64.
    B, D, L = 8, 32, 64

    key = jax.random.PRNGKey(0)
    k_h, k_wmu, k_bmu, k_wlv, k_blv, k_eps = jax.random.split(key, 6)

    # Deterministic parameter init (PyTorch Linear-style uniform(-1/sqrt(D), 1/sqrt(D))).
    bound = 1.0 / jnp.sqrt(jnp.float32(D))
    h_shared = jax.random.normal(k_h, (B, D), dtype=jnp.float32)
    w_mu = jax.random.uniform(k_wmu, (D, L), jnp.float32, -bound, bound)
    b_mu = jax.random.uniform(k_bmu, (L,), jnp.float32, -bound, bound)
    w_lv = jax.random.uniform(k_wlv, (D, L), jnp.float32, -bound, bound)
    b_lv = jax.random.uniform(k_blv, (L,), jnp.float32, -bound, bound)

    z, mu, logvar = variance_modeling_head(h_shared, w_mu, b_mu, w_lv, b_lv, k_eps)
    jax.block_until_ready((z, mu, logvar))

    # Reference (plain JAX) -- eps is reproducible from k_eps, so z is fully checkable.
    mu_ref = h_shared @ w_mu + b_mu
    lv_ref = h_shared @ w_lv + b_lv
    eps_ref = jax.random.normal(k_eps, (B, L), dtype=jnp.float32)
    z_ref = mu_ref + eps_ref * jnp.exp(0.5 * lv_ref)

    assert jnp.allclose(mu, mu_ref, atol=1e-5, rtol=1e-5)
    assert jnp.allclose(logvar, lv_ref, atol=1e-5, rtol=1e-5)
    assert jnp.allclose(z, z_ref, atol=1e-5, rtol=1e-5)
    assert jnp.all(jnp.isfinite(z))

    print("KERNEL_OK")
</pallas_src>

<mosaic_0001>
module attributes {stable_mosaic.version = 11 : i64} {
  func.func @_variance_head_kernel(%arg0: i32, %arg1: memref<8x32xf32, #tpu.memory_space<vmem>>, %arg2: memref<32x128xf32, #tpu.memory_space<vmem>>, %arg3: memref<1x128xf32, #tpu.memory_space<vmem>>, %arg4: memref<8x64xf32, #tpu.memory_space<vmem>>, %arg5: memref<8x64xf32, #tpu.memory_space<vmem>>, %arg6: memref<8x64xf32, #tpu.memory_space<vmem>>, %arg7: memref<8x64xf32, #tpu.memory_space<vmem>>) attributes {dimension_semantics = [#tpu.dimension_semantics<parallel>], iteration_bounds = array<i64: 1>, scalar_prefetch = 0 : i64, scratch_operands = 0 : i64, tpu.core_type = #tpu.core_type<tc>, window_params = [{transform_indices = @transform_0, window_bounds = array<i64: 8, 32>}, {pipeline_mode = #tpu.pipeline_mode<synchronous>, transform_indices = @transform_1, window_bounds = array<i64: 32, 128>}, {pipeline_mode = #tpu.pipeline_mode<synchronous>, transform_indices = @transform_2, window_bounds = array<i64: 1, 128>}, {transform_indices = @transform_3, window_bounds = array<i64: 8, 64>}, {transform_indices = @transform_4, window_bounds = array<i64: 8, 64>}, {transform_indices = @transform_5, window_bounds = array<i64: 8, 64>}, {transform_indices = @transform_6, window_bounds = array<i64: 8, 64>}]} {
    %c0 = arith.constant 0 : index
    %c0_0 = arith.constant 0 : index
    %0 = vector.load %arg1[%c0, %c0_0] : memref<8x32xf32, #tpu.memory_space<vmem>>, vector<8x32xf32>
    %c0_1 = arith.constant 0 : index
    %c0_2 = arith.constant 0 : index
    %1 = vector.load %arg2[%c0_1, %c0_2] : memref<32x128xf32, #tpu.memory_space<vmem>>, vector<32x128xf32>
    %cst = arith.constant dense<0.000000e+00> : vector<8x128xf32>
    %2 = tpu.matmul %0, %1, %cst {dimension_numbers = #tpu.dot_dimension_numbers<[1], [0], [0], [1], [0, 0, 1, 1], [], []>} : vector<8x32xf32>, vector<32x128xf32>, vector<8x128xf32> -> vector<8x128xf32>
    %c0_3 = arith.constant 0 : index
    %c0_4 = arith.constant 0 : index
    %3 = vector.load %arg3[%c0_3, %c0_4] : memref<1x128xf32, #tpu.memory_space<vmem>>, vector<1x128xf32>
    %4 = vector.broadcast %3 : vector<1x128xf32> to vector<8x128xf32>
    %5 = arith.addf %2, %4 : vector<8x128xf32>
    %6 = vector.extract_strided_slice %5 {offsets = [0, 0], sizes = [8, 64], strides = [1, 1]} : vector<8x128xf32> to vector<8x64xf32>
    %7 = vector.extract_strided_slice %5 {offsets = [0, 64], sizes = [8, 64], strides = [1, 1]} : vector<8x128xf32> to vector<8x64xf32>
    %cst_5 = arith.constant 5.000000e-01 : f32
    %8 = vector.broadcast %cst_5 : f32 to vector<8x64xf32>
    %9 = arith.mulf %8, %7 : vector<8x64xf32>
    %10 = math.exp %9 : vector<8x64xf32>
    %c0_6 = arith.constant 0 : index
    %c0_7 = arith.constant 0 : index
    %11 = vector.load %arg4[%c0_6, %c0_7] : memref<8x64xf32, #tpu.memory_space<vmem>>, vector<8x64xf32>
    %12 = arith.mulf %11, %10 : vector<8x64xf32>
    %13 = arith.addf %6, %12 : vector<8x64xf32>
    %c0_8 = arith.constant 0 : index
    %c0_9 = arith.constant 0 : index
    %14 = vector.load %arg5[%c0_8, %c0_9] : memref<8x64xf32, #tpu.memory_space<vmem>>, vector<8x64xf32>
    tpu.vector_store %arg5[%c0_8, %c0_9], %13 {strides = array<i32>} : memref<8x64xf32, #tpu.memory_space<vmem>>, vector<8x64xf32>,
    %c0_10 = arith.constant 0 : index
    %c0_11 = arith.constant 0 : index
    %15 = vector.load %arg6[%c0_10, %c0_11] : memref<8x64xf32, #tpu.memory_space<vmem>>, vector<8x64xf32>
    tpu.vector_store %arg6[%c0_10, %c0_11], %6 {strides = array<i32>} : memref<8x64xf32, #tpu.memory_space<vmem>>, vector<8x64xf32>,
    %c0_12 = arith.constant 0 : index
    %c0_13 = arith.constant 0 : index
    %16 = vector.load %arg7[%c0_12, %c0_13] : memref<8x64xf32, #tpu.memory_space<vmem>>, vector<8x64xf32>
    tpu.vector_store %arg7[%c0_12, %c0_13], %7 {strides = array<i32>} : memref<8x64xf32, #tpu.memory_space<vmem>>, vector<8x64xf32>,
    return
  }
  func.func @transform_0(%arg0: i32) -> (i32, i32) {
    %c0_i32 = arith.constant 0 : i32
    %c0_i32_0 = arith.constant 0 : i32
    return %arg0, %c0_i32 : i32, i32
  }
  func.func @transform_1(%arg0: i32) -> (i32, i32) {
    %c0_i32 = arith.constant 0 : i32
    %c0_i32_0 = arith.constant 0 : i32
    %c0_i32_1 = arith.constant 0 : i32
    return %c0_i32, %c0_i32_0 : i32, i32
  }
  func.func @transform_2(%arg0: i32) -> (i32, i32) {
    %c0_i32 = arith.constant 0 : i32
    %c0_i32_0 = arith.constant 0 : i32
    %c0_i32_1 = arith.constant 0 : i32
    return %c0_i32, %c0_i32_0 : i32, i32
  }
  func.func @transform_3(%arg0: i32) -> (i32, i32) {
    %c0_i32 = arith.constant 0 : i32
    %c0_i32_0 = arith.constant 0 : i32
    return %arg0, %c0_i32 : i32, i32
  }
  func.func @transform_4(%arg0: i32) -> (i32, i32) {
    %c0_i32 = arith.constant 0 : i32
    %c0_i32_0 = arith.constant 0 : i32
    return %arg0, %c0_i32 : i32, i32
  }
  func.func @transform_5(%arg0: i32) -> (i32, i32) {
    %c0_i32 = arith.constant 0 : i32
    %c0_i32_0 = arith.constant 0 : i32
    return %arg0, %c0_i32 : i32, i32
  }
  func.func @transform_6(%arg0: i32) -> (i32, i32) {
    %c0_i32 = arith.constant 0 : i32
    %c0_i32_0 = arith.constant 0 : i32
    return %arg0, %c0_i32 : i32, i32
  }
}

</mosaic_0001>

<llo_original>
// kernel: tpu_custom_call.1
$region0: #{tpu_custom_call.1}
  #allocation0 [shape = 'u32[]', space=smem, size = 0x4, offset = 0x4, fixed_abs, tag = 'smem constant byte address 0x4 - core index']
  #allocation1 [shape = 'u32[144,128]{1,0:T(1,128)}', space=vmem, size = 0x12000, scoped, tag = 'internal scratch']
  %s0 = inlined_call_operand.hbm [shape: f32[8,32], index: 0, kind: input, shape index: {}]
  %s1 = inlined_call_operand.hbm [shape: f32[32,128], index: 1, kind: input, shape index: {}]
  %s2 = inlined_call_operand.vmem [shape: f32[1,128], index: 2, kind: input, shape index: {}]
  %s3 = inlined_call_operand.hbm [shape: f32[8,64], index: 3, kind: input, shape index: {}]
  %s4 = inlined_call_operand.hbm [shape: f32[8,64], index: 4, kind: output, shape index: {0}]
  %s5 = inlined_call_operand.hbm [shape: f32[8,64], index: 5, kind: output, shape index: {1}]
  %s6 = inlined_call_operand.hbm [shape: f32[8,64], index: 6, kind: output, shape index: {2}]
  %7 = xla_tuple %s4, %s5, %s6
  %s8 = sld [smem:[#allocation0]]
  $region54: #{tpu_custom_call.1} parent=0
    _
  %s10 = ssub.s32 1, %s8
  %s11 = scalar_select 0, %s10, %s8
  $region1: #{tpu_custom_call.1} parent=0
    #allocation2 [shape = 'u8[4096]{0}', space=vmem, size = 0x1000, scoped, tag = 'input window, operand 0, single buffered']
    #allocation3 [shape = 's32[1]{0}', space=sflag, size = 0x4, scoped, tag = 'scoped memory for tpu_custom_call.1']
    #allocation4 [shape = 's32[1]{0}', space=sflag, size = 0x4, scoped, tag = 'scoped memory for tpu_custom_call.1']
    #allocation5 [shape = 'u8[16384]{0}', space=vmem, size = 0x4000, scoped, tag = 'input window, operand 1, single buffered']
    #allocation6 [shape = 's32[1]{0}', space=sflag, size = 0x4, scoped, tag = 'scoped memory for tpu_custom_call.1']
    #allocation7 [shape = 'u8[4096]{0}', space=vmem, size = 0x1000, scoped, tag = 'input window, operand 3, single buffered']
    #allocation8 [shape = 'u8[4096]{0}', space=vmem, size = 0x1000, scoped, tag = 'output window, operand 0, single buffered']
    #allocation9 [shape = 'u8[4096]{0}', space=vmem, size = 0x1000, scoped, tag = 'output window, operand 1, single buffered']
    #allocation10 [shape = 's32[1]{0}', space=sflag, size = 0x4, scoped, tag = 'scoped memory for tpu_custom_call.1']
    #allocation11 [shape = 'u8[4096]{0}', space=vmem, size = 0x1000, scoped, tag = 'output window, operand 2, single buffered']
    %12 = vsyncpa [#allocation3], 0
    %13 = vsyncpa [#allocation6], 0
    %14 = vsyncpa [#allocation4], 0
    %15 = vsyncpa [#allocation10], 0
    // Predicated region
    $region2: #{tpu_custom_call.1} parent=1 // pred_check
      _
    $region3: #{tpu_custom_call.1} parent=1 // pred_check_branch
      %17 = sbr.rel (0) target = $region5
    $region4: #{tpu_custom_call.1} parent=1 // pred_region
      %s19 = ssub.s32 128, 128
      %20 = vsyncadd [#allocation3], %s19
      %s22 = sshll.u32 [#allocation2], 4
      %s23 = int_to_ptr.vmem [resolvable:$true] %s22
      %25 = dma.hbm_to_vmem [thread:$0]  %s0, 128, %s23, [#allocation3]
    $region5: #{tpu_custom_call.1} parent=1 // pred_fallthru
      _
    // Predicated region
    $region6: #{tpu_custom_call.1} parent=1 // pred_check
      _
    $region7: #{tpu_custom_call.1} parent=1 // pred_check_branch
      %27 = sbr.rel (0) target = $region9
    $region8: #{tpu_custom_call.1} parent=1 // pred_region
      %s29 = ssub.s32 512, 512
      %30 = vsyncadd [#allocation6], %s29
      %s31 = sshll.u32 [#allocation5], 4
      %s32 = int_to_ptr.vmem [resolvable:$true] %s31
      %37 = dma.hbm_to_vmem [thread:$0]  %s1, 512, %s32, [#allocation6], 128, 128, 8
    $region9: #{tpu_custom_call.1} parent=1 // pred_fallthru
      _
    // Predicated region
    $region10: #{tpu_custom_call.1} parent=1 // pred_check
      _
    $region11: #{tpu_custom_call.1} parent=1 // pred_check_branch
      %39 = sbr.rel (0) target = $region13
    $region12: #{tpu_custom_call.1} parent=1 // pred_region
      _
    $region13: #{tpu_custom_call.1} parent=1 // pred_fallthru
      _
    // Predicated region
    $region14: #{tpu_custom_call.1} parent=1 // pred_check
      _
    $region15: #{tpu_custom_call.1} parent=1 // pred_check_branch
      %41 = sbr.rel (0) target = $region17
    $region16: #{tpu_custom_call.1} parent=1 // pred_region
      %s43 = ssub.s32 128, 128
      %44 = vsyncadd [#allocation6], %s43
      %s46 = sshll.u32 [#allocation7], 4
      %s47 = int_to_ptr.vmem [resolvable:$true] %s46
      %49 = dma.hbm_to_vmem [thread:$0]  %s3, 128, %s47, [#allocation6]
    $region17: #{tpu_custom_call.1} parent=1 // pred_fallthru
      _
    // Predicated region
    $region18: #{tpu_custom_call.1} parent=1 // pred_check
      _
    $region19: #{tpu_custom_call.1} parent=1 // pred_check_branch
      %51 = sbr.rel (0) target = $region21
    $region20: #{tpu_custom_call.1} parent=1 // pred_region
      %52 = dma.done [#allocation3], 128
    $region21: #{tpu_custom_call.1} parent=1 // pred_fallthru
      _
    // Predicated region
    $region22: #{tpu_custom_call.1} parent=1 // pred_check
      _
    $region23: #{tpu_custom_call.1} parent=1 // pred_check_branch
      %54 = sbr.rel (0) target = $region25
    $region24: #{tpu_custom_call.1} parent=1 // pred_region
      %55 = dma.done [#allocation6], 512
    $region25: #{tpu_custom_call.1} parent=1 // pred_fallthru
      _
    // Predicated region
    $region26: #{tpu_custom_call.1} parent=1 // pred_check
      _
    $region27: #{tpu_custom_call.1} parent=1 // pred_check_branch
      %57 = sbr.rel (0) target = $region29
    $region28: #{tpu_custom_call.1} parent=1 // pred_region
      %58 = dma.done [#allocation6], 128
    $region29: #{tpu_custom_call.1} parent=1 // pred_fallthru
      _
    %v59 = vld [vmem:[#allocation2] sm:$0xff]
    %v60 = vld [vmem:[#allocation5] sm:$0xff]
    %v61 = vld [vmem:[#allocation5 + $0x8] sm:$0xff]
    %v62 = vld [vmem:[#allocation5 + $0x10] sm:$0xff]
    %v63 = vld [vmem:[#allocation5 + $0x18] sm:$0xff]
    %v64 = vld [vmem:[%s2] sm:$0x1]
    %v66 = vlaneseq
    %v67 = vshrl.u32 %v66, 7
    %v68 = vsub.s32 0, %v67
    %v69 = vrot.slane %v64, %v68
    %vm71 = vcmask 261120
    %v73 = vsel %vm71, %v59, 0
    %75 = vmatprep.subr.mxu0 0.0
    %76 = vmatpush1.msra.mxu0 0.0
    %77 = vmatprep.subr.mxu0 0.0
    %78 = vmatpush1.msra.mxu0 0.0
    %79 = vmatprep.subr.mxu0 0.0
    %80 = vmatpush1.msra.mxu0 0.0
    %81 = vmatprep.subr.mxu0 0.0
    %82 = vmatpush1.msra.mxu0 0.0
    %83 = vmatprep.subr.mxu0 0.0
    %84 = vmatpush1.msra.mxu0 0.0
    %85 = vmatprep.subr.mxu0 0.0
    %86 = vmatpush1.msra.mxu0 0.0
    %87 = vmatprep.subr.mxu0 0.0
    %88 = vmatpush1.msra.mxu0 0.0
    %89 = vmatprep.subr.mxu0 0.0
    %90 = vmatpush1.msra.mxu0 0.0
    %91 = vmatprep.subr.mxu0 0.0
    %92 = vmatpush1.msra.mxu0 0.0
    %93 = vmatprep.subr.mxu0 0.0
    %94 = vmatpush1.msra.mxu0 0.0
    %95 = vmatprep.subr.mxu0 0.0
    %96 = vmatpush1.msra.mxu0 0.0
    %97 = vmatprep.subr.mxu0 0.0
    %98 = vmatpush1.msra.mxu0 0.0
    %99 = vmatprep.subr.mxu0 0.0
    %100 = vmatpush1.msra.mxu0 %v63
    %101 = vmatprep.subr.mxu0 0.0
    %102 = vmatpush1.msra.mxu0 %v62
    %103 = vmatprep.subr.mxu0 0.0
    %104 = vmatpush1.msra.mxu0 %v61
    %105 = vmatprep.subr.mxu0 0.0
    %106 = vmatpush1.msra.mxu0 %v60
    %107 = vmatprep.subr.mxu0 0.0
    %108 = vmatpush2.msra.mxu0 0.0
    %109 = vmatprep.subr.mxu0 0.0
    %110 = vmatpush2.msra.mxu0 0.0
    %111 = vmatprep.subr.mxu0 0.0
    %112 = vmatpush2.msra.mxu0 0.0
    %113 = vmatprep.subr.mxu0 0.0
    %114 = vmatpush2.msra.mxu0 0.0
    %115 = vmatprep.subr.mxu0 0.0
    %116 = vmatpush2.msra.mxu0 0.0
    %117 = vmatprep.subr.mxu0 0.0
    %118 = vmatpush2.msra.mxu0 0.0
    %119 = vmatprep.subr.mxu0 0.0
    %120 = vmatpush2.msra.mxu0 0.0
    %121 = vmatprep.subr.mxu0 0.0
    %122 = vmatpush2.msra.mxu0 0.0
    %123 = vmatprep.subr.mxu0 0.0
    %124 = vmatpush2.msra.mxu0 0.0
    %125 = vmatprep.subr.mxu0 0.0
    %126 = vmatpush2.msra.mxu0 0.0
    %127 = vmatprep.subr.mxu0 0.0
    %128 = vmatpush2.msra.mxu0 0.0
    %129 = vmatprep.subr.mxu0 0.0
    %130 = vmatpush2.msra.mxu0 0.0
    %131 = vmatprep.subr.mxu0 0.0
    %132 = vmatpush2.msra.mxu0 0.0
    %133 = vmatprep.subr.mxu0 0.0
    %134 = vmatpush2.msra.mxu0 0.0
    %135 = vmatprep.subr.mxu0 0.0
    %136 = vmatpush2.msra.mxu0 0.0
    %137 = vmatprep.subr.mxu0 0.0
    %138 = vmatpush2.msra.mxu0 0.0
    %139 = vmatprep.mubr.f32.mxu0 0.0
    %140 = vmatmul.mubr.f32.gmra.mxu0 %v73
    %v141 = vpop.f32.mrf.mxu0
    %v142 = vadd.f32 %v69, %v141
    %v143 = vpop.f32.mrf.mxu0
    %144 = vdwg.mxu0
    %v145 = vmul.f32 %v142, 0.5
    %v146 = vmul.f32 %v145, 1.442695
    %v147 = vpow.pop %v146
    %v148 = vld [vmem:[#allocation7] sm:$0xff]
    %150 = vrot.lane.b32.xlu0 %v147, 64
    %v151 = vpop.permute.xlu0 %150
    %v153 = vmul.f32 %v148, %v151
    %v154 = vadd.f32 %v142, %v153
    %vm155 = vcmask 523264
    %156 = vst.msk [vmem:[#allocation8] sm:$0xff] %vm155, %v154
    %157 = vst.msk [vmem:[#allocation9] sm:$0xff] %vm155, %v142
    %159 = vrot.lane.b32.xlu0 %v142, 64
    %v160 = vpop.permute.xlu0 %159
    %162 = vst.msk [vmem:[#allocation11] sm:$0xff] %vm155, %v160
    // Predicated region
    $region30: #{tpu_custom_call.1} parent=1 // pred_check
      _
    $region31: #{tpu_custom_call.1} parent=1 // pred_check_branch
      %164 = sbr.rel (0) target = $region33
    $region32: #{tpu_custom_call.1} parent=1 // pred_region
      %s166 = ssub.s32 128, 128
      %167 = vsyncadd [#allocation4], %s166
      %s169 = sshll.u32 [#allocation8], 4
      %s170 = int_to_ptr.vmem [resolvable:$true] %s169
      %172 = dma.vmem_to_hbm [thread:$0]  %s170, 128, %s4, [#allocation4]
    $region33: #{tpu_custom_call.1} parent=1 // pred_fallthru
      _
    // Predicated region
    $region34: #{tpu_custom_call.1} parent=1 // pred_check
      _
    $region35: #{tpu_custom_call.1} parent=1 // pred_check_branch
      %174 = sbr.rel (0) target = $region37
    $region36: #{tpu_custom_call.1} parent=1 // pred_region
      %s176 = ssub.s32 128, 128
      %177 = vsyncadd [#allocation10], %s176
      %s179 = sshll.u32 [#allocation9], 4
      %s180 = int_to_ptr.vmem [resolvable:$true] %s179
      %182 = dma.vmem_to_hbm [thread:$0]  %s180, 128, %s5, [#allocation10]
    $region37: #{tpu_custom_call.1} parent=1 // pred_fallthru
      _
    // Predicated region
    $region38: #{tpu_custom_call.1} parent=1 // pred_check
      _
    $region39: #{tpu_custom_call.1} parent=1 // pred_check_branch
      %184 = sbr.rel (0) target = $region41
    $region40: #{tpu_custom_call.1} parent=1 // pred_region
      %s186 = ssub.s32 128, 128
      %187 = vsyncadd [#allocation10], %s186
      %s189 = sshll.u32 [#allocation11], 4
      %s190 = int_to_ptr.vmem [resolvable:$true] %s189
      %192 = dma.vmem_to_hbm [thread:$0]  %s190, 128, %s6, [#allocation10]
    $region41: #{tpu_custom_call.1} parent=1 // pred_fallthru
      _
    // Predicated region
    $region42: #{tpu_custom_call.1} parent=1 // pred_check
      _
    $region43: #{tpu_custom_call.1} parent=1 // pred_check_branch
      %194 = sbr.rel (0) target = $region45
    $region44: #{tpu_custom_call.1} parent=1 // pred_region
      %195 = dma.done [#allocation4], 128
    $region45: #{tpu_custom_call.1} parent=1 // pred_fallthru
      _
    // Predicated region
    $region46: #{tpu_custom_call.1} parent=1 // pred_check
      _
    $region47: #{tpu_custom_call.1} parent=1 // pred_check_branch
      %197 = sbr.rel (0) target = $region49
    $region48: #{tpu_custom_call.1} parent=1 // pred_region
      %198 = dma.done [#allocation10], 128
    $region49: #{tpu_custom_call.1} parent=1 // pred_fallthru
      _
    // Predicated region
    $region50: #{tpu_custom_call.1} parent=1 // pred_check
      _
    $region51: #{tpu_custom_call.1} parent=1 // pred_check_branch
      %200 = sbr.rel (0) target = $region53
    $region52: #{tpu_custom_call.1} parent=1 // pred_region
      %201 = dma.done [#allocation10], 128
    $region53: #{tpu_custom_call.1} parent=1 // pred_fallthru
      _
    %202 = vsyncpa [#allocation3], 1
    %203 = vsyncpa [#allocation6], 1
    %204 = vsyncpa [#allocation4], 1
    %205 = vsyncpa [#allocation10], 1

</llo_original>
